<compile_context>
chip_gen: v5e
topology: v5e:2x2
jax: 0.10.0
libtpu: 0.0.40
codegen_flags: <defaults>
</compile_context>

<pallas_src>
import jax
import jax.numpy as jnp
from jax.experimental import pallas as pl
from jax.experimental.pallas import tpu as pltpu

BN_EPS = 1e-5
NC_PAD = 128  # lane-dense padded class dimension


# ----------------------------------------------------------------------------
# Fused kernel: stand-in backbone + normalize + (folded-BN) MLP head
# ----------------------------------------------------------------------------
def _fused_kernel(x_ref, we_ref, w1_ref, b1_ref, w2_ref, b2_ref,
                  w3_ref, b3_ref, out_ref):
    # ---- stand-in visual backbone: linear projection of the flat image ----
    xb = x_ref[...].astype(jnp.bfloat16)                         # (TB, K)
    feat = jnp.dot(xb, we_ref[...],
                   preferred_element_type=jnp.float32)           # (TB, D) MXU

    # ---- F.normalize(features, dim=-1): x * rsqrt(max(||x||^2, 1e-24)) ----
    # Equivalent to torch's x / max(||x||_2, 1e-12); rsqrt runs on the EUP.
    ss = jnp.sum(feat * feat, axis=-1, keepdims=True)
    f = feat * jax.lax.rsqrt(jnp.maximum(ss, 1e-24))

    # ---- Dropout(0.5)[eval=id] -> Linear(D,2D) -> BN(folded) -> ReLU ----
    h = jnp.dot(f.astype(jnp.bfloat16), w1_ref[...],
                preferred_element_type=jnp.float32)              # (TB, 2D)
    h = jnp.maximum(h + b1_ref[...], 0.0)

    # ---- Dropout(0.1)[eval=id] -> Linear(2D,D) -> BN(folded) -> ReLU ----
    h = jnp.dot(h.astype(jnp.bfloat16), w2_ref[...],
                preferred_element_type=jnp.float32)              # (TB, D)
    h = jnp.maximum(h + b2_ref[...], 0.0)

    # ---- final Linear(D, NC_PAD) + bias, lane-dense padded output ----
    out_ref[...] = (jnp.dot(h.astype(jnp.bfloat16), w3_ref[...],
                            preferred_element_type=jnp.float32)
                    + b3_ref[...])                               # (TB, NC_PAD)


def _round_up(n, m):
    return ((n + m - 1) // m) * m


def _pick_tile_b(batch, requested):
    """Choose a sublane-aligned batch tile.

    - batch <= 8: block covers the whole batch (block dim == array dim is
      always legal), single grid step.
    - otherwise: cap at `requested`, keep it a multiple of 8, and try to get
      at least 2 grid steps so the "parallel" axis actually spans both
      TensorCores on v7x. Partial edge blocks are masked by Pallas.
    """
    if batch <= 8:
        return batch
    tb = min(requested, _round_up(pl.cdiv(batch, 2), 8))
    return max(8, tb)


def classifying_model_forward(x, kp, *, num_classes, tile_b=512):
    """x: (B, C, H, W) NCHW (f32 or bf16) -> logits (B, num_classes) f32."""
    B = x.shape[0]
    K = kp["w_embed"].shape[0]
    nc_pad = kp["w3"].shape[1]

    x_flat = x.reshape(B, -1)                 # pure row-major reshape, no copy
    assert x_flat.shape[1] == K, (x_flat.shape, K)

    tb = _pick_tile_b(B, tile_b)
    grid = (pl.cdiv(B, tb),)                  # no pad copy: edge block masked

    def full_spec(shape):
        return pl.BlockSpec(shape, lambda i: (0,) * len(shape))

    out = pl.pallas_call(
        _fused_kernel,
        out_shape=jax.ShapeDtypeStruct((B, nc_pad), jnp.float32),
        grid_spec=pltpu.PrefetchScalarGridSpec(
            num_scalar_prefetch=0,
            grid=grid,
            in_specs=[
                pl.BlockSpec((tb, K), lambda i: (i, 0)),         # image tile
                full_spec(kp["w_embed"].shape),                  # weights stay
                full_spec(kp["w1"].shape), full_spec(kp["b1"].shape),
                full_spec(kp["w2"].shape), full_spec(kp["b2"].shape),
                full_spec(kp["w3"].shape), full_spec(kp["b3"].shape),
            ],
            out_specs=pl.BlockSpec((tb, nc_pad), lambda i: (i, 0)),
        ),
        compiler_params=pltpu.CompilerParams(
            dimension_semantics=("parallel",),          # megacore over batch
            vmem_limit_bytes=32 * 1024 * 1024,          # safe on v5e/v6e/v7x
        ),
    )(x_flat, kp["w_embed"], kp["w1"], kp["b1"], kp["w2"], kp["b2"],
      kp["w3"], kp["b3"])

    return out[:, :num_classes]


# ----------------------------------------------------------------------------
# Parameter construction (PyTorch-style) and one-time kernel-param folding
# ----------------------------------------------------------------------------
def init_params(key, in_ch, img_hw, patch, out_dim, num_classes):
    """Eval-mode parameters mirroring ClassifyingModel's layers."""
    k = jax.random.split(key, 5)
    Kp = in_ch * patch * patch
    D, D2 = out_dim, 2 * out_dim
    f32 = jnp.float32
    return {
        # stand-in backbone: patch-embedding matrix (folded w/ mean-pool later)
        "w_embed": jax.random.normal(k[0], (Kp, D), f32) * (1.0 / jnp.sqrt(Kp)),
        # nn.Linear(D, 2D, bias=False) stored as (in, out) == torch weight.T
        "w1": jax.random.normal(k[1], (D, D2), f32) * (1.0 / jnp.sqrt(D)),
        "g1": jnp.ones((1, D2), f32), "b1": jnp.zeros((1, D2), f32),
        "m1": jnp.zeros((1, D2), f32), "v1": jnp.ones((1, D2), f32),
        # nn.Linear(2D, D, bias=False)
        "w2": jax.random.normal(k[2], (D2, D), f32) * (1.0 / jnp.sqrt(D2)),
        "g2": jnp.ones((1, D), f32), "b2": jnp.zeros((1, D), f32),
        "m2": jnp.zeros((1, D), f32), "v2": jnp.ones((1, D), f32),
        # nn.Linear(D, num_classes) with bias
        "w3": jax.random.normal(k[3], (D, num_classes), f32) * (1.0 / jnp.sqrt(D)),
        "b3": jax.random.normal(k[4], (1, num_classes), f32) * 0.01,
    }


def _expand_patch_embed(w_embed, C, H, W, patch):
    """Fold (mean over non-overlapping patches) ∘ (patch embedding) into one
    (C*H*W, D) matrix so the image is consumed flat (no host transpose)."""
    ph, pw = H // patch, W // patch
    P = ph * pw
    D = w_embed.shape[1]
    w = w_embed.reshape(C, patch, patch, D) / P
    w_full = jnp.tile(w[:, None, :, None, :, :], (1, ph, 1, pw, 1, 1))
    return w_full.reshape(C * H * W, D)


def fold_params(p, *, img_chw, patch, num_classes, nc_pad=NC_PAD, bn_eps=BN_EPS):
    """One-time transform: expand backbone matrix, fold eval-mode BatchNorm
    into the preceding Linear, lane-pad the classifier, cast MXU operands
    to bf16 (biases stay f32)."""
    C, H, W = img_chw
    s1 = p["g1"] * jax.lax.rsqrt(p["v1"] + bn_eps)       # (1, 2D)
    s2 = p["g2"] * jax.lax.rsqrt(p["v2"] + bn_eps)       # (1, D)
    D = p["w3"].shape[0]
    w3p = jnp.zeros((D, nc_pad), jnp.float32).at[:, :num_classes].set(p["w3"])
    b3p = jnp.zeros((1, nc_pad), jnp.float32).at[:, :num_classes].set(p["b3"])
    return {
        "w_embed": _expand_patch_embed(p["w_embed"], C, H, W, patch).astype(jnp.bfloat16),
        "w1": (p["w1"] * s1).astype(jnp.bfloat16),
        "b1": (p["b1"] - p["m1"] * s1).astype(jnp.float32),
        "w2": (p["w2"] * s2).astype(jnp.bfloat16),
        "b2": (p["b2"] - p["m2"] * s2).astype(jnp.float32),
        "w3": w3p.astype(jnp.bfloat16),
        "b3": b3p,
    }


if __name__ == "__main__":
    key = jax.random.PRNGKey(0)
    kx, kw = jax.random.split(key)

    # small shapes: batch=2, channels=3 (RGB), spatial=16, patch=8,
    # out_dim=128 (lane-aligned), num_classes=14 (padded to 128 in-kernel)
    B, C, H, W = 2, 3, 16, 16
    PATCH, OUT_DIM, NUM_CLASSES = 8, 128, 14

    x = jax.random.normal(kx, (B, C, H, W), jnp.float32)        # NCHW like PyTorch
    params = init_params(kw, C, (H, W), PATCH, OUT_DIM, NUM_CLASSES)
    kparams = fold_params(params, img_chw=(C, H, W), patch=PATCH,
                          num_classes=NUM_CLASSES)

    out = classifying_model_forward(x, kparams, num_classes=NUM_CLASSES)
    out = jax.block_until_ready(out)

    assert out.shape == (B, NUM_CLASSES), out.shape
    assert bool(jnp.all(jnp.isfinite(out)))
    print("KERNEL_OK")
</pallas_src>

<mosaic_0001>
module attributes {stable_mosaic.version = 11 : i64} {
  func.func @_fused_kernel(%arg0: i32, %arg1: memref<2x768xf32, #tpu.memory_space<vmem>>, %arg2: memref<768x128xbf16, #tpu.memory_space<vmem>>, %arg3: memref<128x256xbf16, #tpu.memory_space<vmem>>, %arg4: memref<1x256xf32, #tpu.memory_space<vmem>>, %arg5: memref<256x128xbf16, #tpu.memory_space<vmem>>, %arg6: memref<1x128xf32, #tpu.memory_space<vmem>>, %arg7: memref<128x128xbf16, #tpu.memory_space<vmem>>, %arg8: memref<1x128xf32, #tpu.memory_space<vmem>>, %arg9: memref<2x128xf32, #tpu.memory_space<vmem>>) attributes {dimension_semantics = [#tpu.dimension_semantics<parallel>], iteration_bounds = array<i64: 1>, scalar_prefetch = 0 : i64, scratch_operands = 0 : i64, tpu.core_type = #tpu.core_type<tc>, window_params = [{transform_indices = @transform_0, window_bounds = array<i64: 2, 768>}, {pipeline_mode = #tpu.pipeline_mode<synchronous>, transform_indices = @transform_1, window_bounds = array<i64: 768, 128>}, {pipeline_mode = #tpu.pipeline_mode<synchronous>, transform_indices = @transform_2, window_bounds = array<i64: 128, 256>}, {pipeline_mode = #tpu.pipeline_mode<synchronous>, transform_indices = @transform_3, window_bounds = array<i64: 1, 256>}, {pipeline_mode = #tpu.pipeline_mode<synchronous>, transform_indices = @transform_4, window_bounds = array<i64: 256, 128>}, {pipeline_mode = #tpu.pipeline_mode<synchronous>, transform_indices = @transform_5, window_bounds = array<i64: 1, 128>}, {pipeline_mode = #tpu.pipeline_mode<synchronous>, transform_indices = @transform_6, window_bounds = array<i64: 128, 128>}, {pipeline_mode = #tpu.pipeline_mode<synchronous>, transform_indices = @transform_7, window_bounds = array<i64: 1, 128>}, {transform_indices = @transform_8, window_bounds = array<i64: 2, 128>}]} {
    %c0 = arith.constant 0 : index
    %c0_0 = arith.constant 0 : index
    %0 = vector.load %arg1[%c0, %c0_0] : memref<2x768xf32, #tpu.memory_space<vmem>>, vector<2x768xf32>
    %1 = arith.truncf %0 : vector<2x768xf32> to vector<2x768xbf16>
    %c0_1 = arith.constant 0 : index
    %c0_2 = arith.constant 0 : index
    %2 = vector.load %arg2[%c0_1, %c0_2] : memref<768x128xbf16, #tpu.memory_space<vmem>>, vector<768x128xbf16>
    %cst = arith.constant dense<0.000000e+00> : vector<2x128xf32>
    %3 = tpu.matmul %1, %2, %cst {dimension_numbers = #tpu.dot_dimension_numbers<[1], [0], [0], [1], [0, 0, 1, 1], [], []>} : vector<2x768xbf16>, vector<768x128xbf16>, vector<2x128xf32> -> vector<2x128xf32>
    %4 = arith.mulf %3, %3 : vector<2x128xf32>
    %cst_3 = arith.constant dense<0.000000e+00> : vector<2xf32>
    %5 = vector.multi_reduction <add>, %4, %cst_3 [1] : vector<2x128xf32> to vector<2xf32>
    %6 = vector.shape_cast %5 : vector<2xf32> to vector<2x1xf32>
    %cst_4 = arith.constant 1.000000e-24 : f32
    %7 = vector.broadcast %cst_4 : f32 to vector<2x1xf32>
    %8 = arith.maximumf %6, %7 : vector<2x1xf32>
    %9 = math.rsqrt %8 : vector<2x1xf32>
    %10 = vector.broadcast %9 : vector<2x1xf32> to vector<2x128xf32>
    %11 = arith.mulf %3, %10 : vector<2x128xf32>
    %12 = arith.truncf %11 : vector<2x128xf32> to vector<2x128xbf16>
    %c0_5 = arith.constant 0 : index
    %c0_6 = arith.constant 0 : index
    %13 = vector.load %arg3[%c0_5, %c0_6] : memref<128x256xbf16, #tpu.memory_space<vmem>>, vector<128x256xbf16>
    %cst_7 = arith.constant dense<0.000000e+00> : vector<2x256xf32>
    %14 = tpu.matmul %12, %13, %cst_7 {dimension_numbers = #tpu.dot_dimension_numbers<[1], [0], [0], [1], [0, 0, 1, 1], [], []>} : vector<2x128xbf16>, vector<128x256xbf16>, vector<2x256xf32> -> vector<2x256xf32>
    %c0_8 = arith.constant 0 : index
    %c0_9 = arith.constant 0 : index
    %15 = vector.load %arg4[%c0_8, %c0_9] : memref<1x256xf32, #tpu.memory_space<vmem>>, vector<1x256xf32>
    %16 = vector.broadcast %15 : vector<1x256xf32> to vector<2x256xf32>
    %17 = arith.addf %14, %16 : vector<2x256xf32>
    %cst_10 = arith.constant 0.000000e+00 : f32
    %18 = vector.broadcast %cst_10 : f32 to vector<2x256xf32>
    %19 = arith.maximumf %17, %18 : vector<2x256xf32>
    %20 = arith.truncf %19 : vector<2x256xf32> to vector<2x256xbf16>
    %c0_11 = arith.constant 0 : index
    %c0_12 = arith.constant 0 : index
    %21 = vector.load %arg5[%c0_11, %c0_12] : memref<256x128xbf16, #tpu.memory_space<vmem>>, vector<256x128xbf16>
    %cst_13 = arith.constant dense<0.000000e+00> : vector<2x128xf32>
    %22 = tpu.matmul %20, %21, %cst_13 {dimension_numbers = #tpu.dot_dimension_numbers<[1], [0], [0], [1], [0, 0, 1, 1], [], []>} : vector<2x256xbf16>, vector<256x128xbf16>, vector<2x128xf32> -> vector<2x128xf32>
    %c0_14 = arith.constant 0 : index
    %c0_15 = arith.constant 0 : index
    %23 = vector.load %arg6[%c0_14, %c0_15] : memref<1x128xf32, #tpu.memory_space<vmem>>, vector<1x128xf32>
    %24 = vector.broadcast %23 : vector<1x128xf32> to vector<2x128xf32>
    %25 = arith.addf %22, %24 : vector<2x128xf32>
    %cst_16 = arith.constant 0.000000e+00 : f32
    %26 = vector.broadcast %cst_16 : f32 to vector<2x128xf32>
    %27 = arith.maximumf %25, %26 : vector<2x128xf32>
    %28 = arith.truncf %27 : vector<2x128xf32> to vector<2x128xbf16>
    %c0_17 = arith.constant 0 : index
    %c0_18 = arith.constant 0 : index
    %29 = vector.load %arg7[%c0_17, %c0_18] : memref<128x128xbf16, #tpu.memory_space<vmem>>, vector<128x128xbf16>
    %cst_19 = arith.constant dense<0.000000e+00> : vector<2x128xf32>
    %30 = tpu.matmul %28, %29, %cst_19 {dimension_numbers = #tpu.dot_dimension_numbers<[1], [0], [0], [1], [0, 0, 1, 1], [], []>} : vector<2x128xbf16>, vector<128x128xbf16>, vector<2x128xf32> -> vector<2x128xf32>
    %c0_20 = arith.constant 0 : index
    %c0_21 = arith.constant 0 : index
    %31 = vector.load %arg8[%c0_20, %c0_21] : memref<1x128xf32, #tpu.memory_space<vmem>>, vector<1x128xf32>
    %32 = vector.broadcast %31 : vector<1x128xf32> to vector<2x128xf32>
    %33 = arith.addf %30, %32 : vector<2x128xf32>
    %c0_22 = arith.constant 0 : index
    %c0_23 = arith.constant 0 : index
    %34 = vector.load %arg9[%c0_22, %c0_23] : memref<2x128xf32, #tpu.memory_space<vmem>>, vector<2x128xf32>
    tpu.vector_store %arg9[%c0_22, %c0_23], %33 {strides = array<i32>} : memref<2x128xf32, #tpu.memory_space<vmem>>, vector<2x128xf32>,
    return
  }
  func.func @transform_0(%arg0: i32) -> (i32, i32) {
    %c0_i32 = arith.constant 0 : i32
    %c0_i32_0 = arith.constant 0 : i32
    return %arg0, %c0_i32 : i32, i32
  }
  func.func @transform_1(%arg0: i32) -> (i32, i32) {
    %c0_i32 = arith.constant 0 : i32
    %c0_i32_0 = arith.constant 0 : i32
    %c0_i32_1 = arith.constant 0 : i32
    return %c0_i32, %c0_i32_0 : i32, i32
  }
  func.func @transform_2(%arg0: i32) -> (i32, i32) {
    %c0_i32 = arith.constant 0 : i32
    %c0_i32_0 = arith.constant 0 : i32
    %c0_i32_1 = arith.constant 0 : i32
    return %c0_i32, %c0_i32_0 : i32, i32
  }
  func.func @transform_3(%arg0: i32) -> (i32, i32) {
    %c0_i32 = arith.constant 0 : i32
    %c0_i32_0 = arith.constant 0 : i32
    %c0_i32_1 = arith.constant 0 : i32
    return %c0_i32, %c0_i32_0 : i32, i32
  }
  func.func @transform_4(%arg0: i32) -> (i32, i32) {
    %c0_i32 = arith.constant 0 : i32
    %c0_i32_0 = arith.constant 0 : i32
    %c0_i32_1 = arith.constant 0 : i32
    return %c0_i32, %c0_i32_0 : i32, i32
  }
  func.func @transform_5(%arg0: i32) -> (i32, i32) {
    %c0_i32 = arith.constant 0 : i32
    %c0_i32_0 = arith.constant 0 : i32
    %c0_i32_1 = arith.constant 0 : i32
    return %c0_i32, %c0_i32_0 : i32, i32
  }
  func.func @transform_6(%arg0: i32) -> (i32, i32) {
    %c0_i32 = arith.constant 0 : i32
    %c0_i32_0 = arith.constant 0 : i32
    %c0_i32_1 = arith.constant 0 : i32
    return %c0_i32, %c0_i32_0 : i32, i32
  }
  func.func @transform_7(%arg0: i32) -> (i32, i32) {
    %c0_i32 = arith.constant 0 : i32
    %c0_i32_0 = arith.constant 0 : i32
    %c0_i32_1 = arith.constant 0 : i32
    return %c0_i32, %c0_i32_0 : i32, i32
  }
  func.func @transform_8(%arg0: i32) -> (i32, i32) {
    %c0_i32 = arith.constant 0 : i32
    %c0_i32_0 = arith.constant 0 : i32
    return %arg0, %c0_i32 : i32, i32
  }
}

</mosaic_0001>

<llo_original>
// kernel: tpu_custom_call.1
$region0: #{tpu_custom_call.1}
  #allocation0 [shape = 'u32[]', space=smem, size = 0x4, offset = 0x4, fixed_abs, tag = 'smem constant byte address 0x4 - core index']
  #allocation1 [shape = 'u32[72,128]{1,0:T(1,128)}', space=vmem, size = 0x9000, scoped, tag = 'internal scratch']
  %s0 = inlined_call_operand.hbm [shape: f32[2,768], index: 0, kind: input, shape index: {}]
  %s1 = inlined_call_operand.hbm [shape: bf16[768,128], index: 1, kind: input, shape index: {}]
  %s2 = inlined_call_operand.hbm [shape: bf16[128,256], index: 2, kind: input, shape index: {}]
  %s3 = inlined_call_operand.vmem [shape: f32[1,256], index: 3, kind: input, shape index: {}]
  %s4 = inlined_call_operand.hbm [shape: bf16[256,128], index: 4, kind: input, shape index: {}]
  %s5 = inlined_call_operand.vmem [shape: f32[1,128], index: 5, kind: input, shape index: {}]
  %s6 = inlined_call_operand.hbm [shape: bf16[128,128], index: 6, kind: input, shape index: {}]
  %s7 = inlined_call_operand.vmem [shape: f32[1,128], index: 7, kind: input, shape index: {}]
  %s8 = inlined_call_operand.hbm [shape: f32[2,128], index: 8, kind: output, shape index: {}]
  %s9 = sld [smem:[#allocation0]]
  $region62: #{tpu_custom_call.1} parent=0
    _
  %s11 = ssub.s32 1, %s9
  %s12 = scalar_select 0, %s11, %s9
  $region1: #{tpu_custom_call.1} parent=0
    #allocation2 [shape = 'u8[6144]{0}', space=vmem, size = 0x1800, scoped, tag = 'input window, operand 0, single buffered']
    #allocation3 [shape = 's32[1]{0}', space=sflag, size = 0x4, scoped, tag = 'scoped memory for tpu_custom_call.1']
    #allocation4 [shape = 's32[1]{0}', space=sflag, size = 0x4, scoped, tag = 'scoped memory for tpu_custom_call.1']
    #allocation5 [shape = 'u8[196608]{0}', space=vmem, size = 0x30000, scoped, tag = 'input window, operand 1, single buffered']
    #allocation6 [shape = 's32[1]{0}', space=sflag, size = 0x4, scoped, tag = 'scoped memory for tpu_custom_call.1']
    #allocation7 [shape = 'u8[65536]{0}', space=vmem, size = 0x10000, scoped, tag = 'input window, operand 2, single buffered']
    #allocation8 [shape = 'u8[65536]{0}', space=vmem, size = 0x10000, scoped, tag = 'input window, operand 4, single buffered']
    #allocation9 [shape = 's32[1]{0}', space=sflag, size = 0x4, scoped, tag = 'scoped memory for tpu_custom_call.1']
    #allocation10 [shape = 'u8[32768]{0}', space=vmem, size = 0x8000, scoped, tag = 'input window, operand 6, single buffered']
    #allocation11 [shape = 'u8[1024]{0}', space=vmem, size = 0x400, scoped, tag = 'output window, operand 0, single buffered']
    %13 = vsyncpa [#allocation3], 0
    %14 = vsyncpa [#allocation6], 0
    %15 = vsyncpa [#allocation9], 0
    %16 = vsyncpa [#allocation4], 0
    // Predicated region
    $region2: #{tpu_custom_call.1} parent=1 // pred_check
      _
    $region3: #{tpu_custom_call.1} parent=1 // pred_check_branch
      %18 = sbr.rel (0) target = $region5
    $region4: #{tpu_custom_call.1} parent=1 // pred_region
      %20 = vsyncadd [#allocation3], 0
      %s22 = sshll.u32 %s0, 4
      %s23 = int_to_ptr.hbm [resolvable:$true] %s22
      %s24 = sshll.u32 [#allocation2], 4
      %s25 = int_to_ptr.vmem [resolvable:$true] %s24
      %27 = dma.hbm_to_vmem [thread:$0]  %s23, 192, %s25, [#allocation3]
    $region5: #{tpu_custom_call.1} parent=1 // pred_fallthru
      _
    // Predicated region
    $region6: #{tpu_custom_call.1} parent=1 // pred_check
      _
    $region7: #{tpu_custom_call.1} parent=1 // pred_check_branch
      %29 = sbr.rel (0) target = $region9
    $region8: #{tpu_custom_call.1} parent=1 // pred_region
      %31 = vsyncadd [#allocation6], 0
      %s32 = sshll.u32 %s1, 4
      %s33 = int_to_ptr.hbm [resolvable:$true] %s32
      %s34 = sshll.u32 [#allocation5], 4
      %s35 = int_to_ptr.vmem [resolvable:$true] %s34
      %40 = dma.hbm_to_vmem [thread:$0]  %s33, 6144, %s35, [#allocation6], 64, 64, 4
    $region9: #{tpu_custom_call.1} parent=1 // pred_fallthru
      _
    // Predicated region
    $region10: #{tpu_custom_call.1} parent=1 // pred_check
      _
    $region11: #{tpu_custom_call.1} parent=1 // pred_check_branch
      %42 = sbr.rel (0) target = $region13
    $region12: #{tpu_custom_call.1} parent=1 // pred_region
      %44 = vsyncadd [#allocation6], 0
      %s45 = sshll.u32 %s2, 4
      %s46 = int_to_ptr.hbm [resolvable:$true] %s45
      %s47 = sshll.u32 [#allocation7], 4
      %s48 = int_to_ptr.vmem [resolvable:$true] %s47
      %53 = dma.hbm_to_vmem [thread:$0]  %s46, 2048, %s48, [#allocation6], 128, 128, 8
    $region13: #{tpu_custom_call.1} parent=1 // pred_fallthru
      _
    // Predicated region
    $region14: #{tpu_custom_call.1} parent=1 // pred_check
      _
    $region15: #{tpu_custom_call.1} parent=1 // pred_check_branch
      %55 = sbr.rel (0) target = $region17
    $region16: #{tpu_custom_call.1} parent=1 // pred_region
      _
    $region17: #{tpu_custom_call.1} parent=1 // pred_fallthru
      _
    // Predicated region
    $region18: #{tpu_custom_call.1} parent=1 // pred_check
      _
    $region19: #{tpu_custom_call.1} parent=1 // pred_check_branch
      %57 = sbr.rel (0) target = $region21
    $region20: #{tpu_custom_call.1} parent=1 // pred_region
      %59 = vsyncadd [#allocation9], 0
      %s60 = sshll.u32 %s4, 4
      %s61 = int_to_ptr.hbm [resolvable:$true] %s60
      %s62 = sshll.u32 [#allocation8], 4
      %s63 = int_to_ptr.vmem [resolvable:$true] %s62
      %68 = dma.hbm_to_vmem [thread:$0]  %s61, 2048, %s63, [#allocation9], 64, 64, 4
    $region21: #{tpu_custom_call.1} parent=1 // pred_fallthru
      _
    // Predicated region
    $region22: #{tpu_custom_call.1} parent=1 // pred_check
      _
    $region23: #{tpu_custom_call.1} parent=1 // pred_check_branch
      %70 = sbr.rel (0) target = $region25
    $region24: #{tpu_custom_call.1} parent=1 // pred_region
      _
    $region25: #{tpu_custom_call.1} parent=1 // pred_fallthru
      _
    // Predicated region
    $region26: #{tpu_custom_call.1} parent=1 // pred_check
      _
    $region27: #{tpu_custom_call.1} parent=1 // pred_check_branch
      %72 = sbr.rel (0) target = $region29
    $region28: #{tpu_custom_call.1} parent=1 // pred_region
      %74 = vsyncadd [#allocation9], 0
      %s75 = sshll.u32 %s6, 4
      %s76 = int_to_ptr.hbm [resolvable:$true] %s75
      %s77 = sshll.u32 [#allocation10], 4
      %s78 = int_to_ptr.vmem [resolvable:$true] %s77
      %83 = dma.hbm_to_vmem [thread:$0]  %s76, 1024, %s78, [#allocation9], 64, 64, 4
    $region29: #{tpu_custom_call.1} parent=1 // pred_fallthru
      _
    // Predicated region
    $region30: #{tpu_custom_call.1} parent=1 // pred_check
      _
    $region31: #{tpu_custom_call.1} parent=1 // pred_check_branch
      %85 = sbr.rel (0) target = $region33
    $region32: #{tpu_custom_call.1} parent=1 // pred_region
      _
    $region33: #{tpu_custom_call.1} parent=1 // pred_fallthru
      _
    // Predicated region
    $region34: #{tpu_custom_call.1} parent=1 // pred_check
      _
    $region35: #{tpu_custom_call.1} parent=1 // pred_check_branch
      %87 = sbr.rel (0) target = $region37
    $region36: #{tpu_custom_call.1} parent=1 // pred_region
      %89 = dma.done [#allocation3], 192
    $region37: #{tpu_custom_call.1} parent=1 // pred_fallthru
      _
    // Predicated region
    $region38: #{tpu_custom_call.1} parent=1 // pred_check
      _
    $region39: #{tpu_custom_call.1} parent=1 // pred_check_branch
      %91 = sbr.rel (0) target = $region41
    $region40: #{tpu_custom_call.1} parent=1 // pred_region
      %93 = dma.done [#allocation6], 6144
    $region41: #{tpu_custom_call.1} parent=1 // pred_fallthru
      _
    // Predicated region
    $region42: #{tpu_custom_call.1} parent=1 // pred_check
      _
    $region43: #{tpu_custom_call.1} parent=1 // pred_check_branch
      %95 = sbr.rel (0) target = $region45
    $region44: #{tpu_custom_call.1} parent=1 // pred_region
      %97 = dma.done [#allocation6], 2048
    $region45: #{tpu_custom_call.1} parent=1 // pred_fallthru
      _
    // Predicated region
    $region46: #{tpu_custom_call.1} parent=1 // pred_check
      _
    $region47: #{tpu_custom_call.1} parent=1 // pred_check_branch
      %99 = sbr.rel (0) target = $region49
    $region48: #{tpu_custom_call.1} parent=1 // pred_region
      %101 = dma.done [#allocation9], 2048
    $region49: #{tpu_custom_call.1} parent=1 // pred_fallthru
      _
    // Predicated region
    $region50: #{tpu_custom_call.1} parent=1 // pred_check
      _
    $region51: #{tpu_custom_call.1} parent=1 // pred_check_branch
      %103 = sbr.rel (0) target = $region53
    $region52: #{tpu_custom_call.1} parent=1 // pred_region
      %105 = dma.done [#allocation9], 1024
    $region53: #{tpu_custom_call.1} parent=1 // pred_fallthru
      _
    %v106 = vld [vmem:[#allocation2] sm:$0xff]
    %v107 = vld [vmem:[#allocation2 + $0x8] sm:$0xf]
    %110 = vst [vmem:[#allocation1] ss:$4 sm:$0xff] %v106
    %s111 = scalar_lea.vmem [#allocation1], 32
    %112 = vst [vmem:[%s111] ss:$4 sm:$0xff] %v107
    %v113 = vld.sshfl [vmem:[#allocation1] sm:$0xff pattern:$0x73625140]
    %v114 = vld.sshfl [vmem:[#allocation1 + $0x8] sm:$0xff pattern:$0x73625140]
    %v115 = vld.sshfl [vmem:[#allocation1 + $0x10] sm:$0xff pattern:$0x73625140]
    %v116 = vld.sshfl [vmem:[#allocation1 + $0x18] sm:$0xff pattern:$0x73625140]
    %v117 = vld.sshfl [vmem:[#allocation1 + $0x20] sm:$0xff pattern:$0x73625140]
    %v118 = vld.sshfl [vmem:[#allocation1 + $0x28] sm:$0xff pattern:$0x73625140]
    %v125 = vpack.c.bf16 %v113, %v113
    %v126 = vpack.c.bf16 %v114, %v114
    %v127 = vpack.c.bf16 %v115, %v115
    %v128 = vpack.c.bf16 %v116, %v116
    %v129 = vpack.c.bf16 %v117, %v117
    %v130 = vpack.c.bf16 %v118, %v118
    %v131 = vld [vmem:[#allocation5] sm:$0xf]
    %v132 = vld [vmem:[#allocation5 + $0x4] sm:$0xf]
    %v133 = vld [vmem:[#allocation5 + $0x8] sm:$0xf]
    %v134 = vld [vmem:[#allocation5 + $0xc] sm:$0xf]
    %v135 = vld [vmem:[#allocation5 + $0x10] sm:$0xf]
    %v136 = vld [vmem:[#allocation5 + $0x14] sm:$0xf]
    %v137 = vld [vmem:[#allocation5 + $0x18] sm:$0xf]
    %v138 = vld [vmem:[#allocation5 + $0x1c] sm:$0xf]
    %v139 = vld [vmem:[#allocation5 + $0x20] sm:$0xf]
    %v140 = vld [vmem:[#allocation5 + $0x24] sm:$0xf]
    %v141 = vld [vmem:[#allocation5 + $0x28] sm:$0xf]
    %v142 = vld [vmem:[#allocation5 + $0x2c] sm:$0xf]
    %v143 = vld [vmem:[#allocation5 + $0x30] sm:$0xf]
    %v144 = vld [vmem:[#allocation5 + $0x34] sm:$0xf]
    %v145 = vld [vmem:[#allocation5 + $0x38] sm:$0xf]
    %v146 = vld [vmem:[#allocation5 + $0x3c] sm:$0xf]
    %v147 = vld [vmem:[#allocation5 + $0x40] sm:$0xf]
    %v148 = vld [vmem:[#allocation5 + $0x44] sm:$0xf]
    %v149 = vld [vmem:[#allocation5 + $0x48] sm:$0xf]
    %v150 = vld [vmem:[#allocation5 + $0x4c] sm:$0xf]
    %v151 = vld [vmem:[#allocation5 + $0x50] sm:$0xf]
    %v152 = vld [vmem:[#allocation5 + $0x54] sm:$0xf]
    %v153 = vld [vmem:[#allocation5 + $0x58] sm:$0xf]
    %v154 = vld [vmem:[#allocation5 + $0x5c] sm:$0xf]
    %v155 = vld [vmem:[#allocation5 + $0x60] sm:$0xf]
    %v156 = vld [vmem:[#allocation5 + $0x64] sm:$0xf]
    %v157 = vld [vmem:[#allocation5 + $0x68] sm:$0xf]
    %v158 = vld [vmem:[#allocation5 + $0x6c] sm:$0xf]
    %v159 = vld [vmem:[#allocation5 + $0x70] sm:$0xf]
    %v160 = vld [vmem:[#allocation5 + $0x74] sm:$0xf]
    %v161 = vld [vmem:[#allocation5 + $0x78] sm:$0xf]
    %v162 = vld [vmem:[#allocation5 + $0x7c] sm:$0xf]
    %v163 = vld [vmem:[#allocation5 + $0x80] sm:$0xf]
    %v164 = vld [vmem:[#allocation5 + $0x84] sm:$0xf]
    %v165 = vld [vmem:[#allocation5 + $0x88] sm:$0xf]
    %v166 = vld [vmem:[#allocation5 + $0x8c] sm:$0xf]
    %v167 = vld [vmem:[#allocation5 + $0x90] sm:$0xf]
    %v168 = vld [vmem:[#allocation5 + $0x94] sm:$0xf]
    %v169 = vld [vmem:[#allocation5 + $0x98] sm:$0xf]
    %v170 = vld [vmem:[#allocation5 + $0x9c] sm:$0xf]
    %v171 = vld [vmem:[#allocation5 + $0xa0] sm:$0xf]
    %v172 = vld [vmem:[#allocation5 + $0xa4] sm:$0xf]
    %v173 = vld [vmem:[#allocation5 + $0xa8] sm:$0xf]
    %v174 = vld [vmem:[#allocation5 + $0xac] sm:$0xf]
    %v175 = vld [vmem:[#allocation5 + $0xb0] sm:$0xf]
    %v176 = vld [vmem:[#allocation5 + $0xb4] sm:$0xf]
    %v177 = vld [vmem:[#allocation5 + $0xb8] sm:$0xf]
    %v178 = vld [vmem:[#allocation5 + $0xbc] sm:$0xf]
    %v179 = vld [vmem:[#allocation5 + $0xc0] sm:$0xf]
    %v180 = vld [vmem:[#allocation5 + $0xc4] sm:$0xf]
    %v181 = vld [vmem:[#allocation5 + $0xc8] sm:$0xf]
    %v182 = vld [vmem:[#allocation5 + $0xcc] sm:$0xf]
    %v183 = vld [vmem:[#allocation5 + $0xd0] sm:$0xf]
    %v184 = vld [vmem:[#allocation5 + $0xd4] sm:$0xf]
    %v185 = vld [vmem:[#allocation5 + $0xd8] sm:$0xf]
    %v186 = vld [vmem:[#allocation5 + $0xdc] sm:$0xf]
    %v187 = vld [vmem:[#allocation5 + $0xe0] sm:$0xf]
    %v188 = vld [vmem:[#allocation5 + $0xe4] sm:$0xf]
    %v189 = vld [vmem:[#allocation5 + $0xe8] sm:$0xf]
    %v190 = vld [vmem:[#allocation5 + $0xec] sm:$0xf]
    %v191 = vld [vmem:[#allocation5 + $0xf0] sm:$0xf]
    %v192 = vld [vmem:[#allocation5 + $0xf4] sm:$0xf]
    %v193 = vld [vmem:[#allocation5 + $0xf8] sm:$0xf]
    %v194 = vld [vmem:[#allocation5 + $0xfc] sm:$0xf]
    %v195 = vld [vmem:[#allocation5 + $0x100] sm:$0xf]
    %v196 = vld [vmem:[#allocation5 + $0x104] sm:$0xf]
    %v197 = vld [vmem:[#allocation5 + $0x108] sm:$0xf]
    %v198 = vld [vmem:[#allocation5 + $0x10c] sm:$0xf]
    %v199 = vld [vmem:[#allocation5 + $0x110] sm:$0xf]
    %v200 = vld [vmem:[#allocation5 + $0x114] sm:$0xf]
    %v201 = vld [vmem:[#allocation5 + $0x118] sm:$0xf]
    %v202 = vld [vmem:[#allocation5 + $0x11c] sm:$0xf]
    %v203 = vld [vmem:[#allocation5 + $0x120] sm:$0xf]
    %v204 = vld [vmem:[#allocation5 + $0x124] sm:$0xf]
    %v205 = vld [vmem:[#allocation5 + $0x128] sm:$0xf]
    %v206 = vld [vmem:[#allocation5 + $0x12c] sm:$0xf]
    %v207 = vld [vmem:[#allocation5 + $0x130] sm:$0xf]
    %v208 = vld [vmem:[#allocation5 + $0x134] sm:$0xf]
    %v209 = vld [vmem:[#allocation5 + $0x138] sm:$0xf]
    %v210 = vld [vmem:[#allocation5 + $0x13c] sm:$0xf]
    %v211 = vld [vmem:[#allocation5 + $0x140] sm:$0xf]
    %v212 = vld [vmem:[#allocation5 + $0x144] sm:$0xf]
    %v213 = vld [vmem:[#allocation5 + $0x148] sm:$0xf]
    %v214 = vld [vmem:[#allocation5 + $0x14c] sm:$0xf]
    %v215 = vld [vmem:[#allocation5 + $0x150] sm:$0xf]
    %v216 = vld [vmem:[#allocation5 + $0x154] sm:$0xf]
    %v217 = vld [vmem:[#allocation5 + $0x158] sm:$0xf]
    %v218 = vld [vmem:[#allocation5 + $0x15c] sm:$0xf]
    %v219 = vld [vmem:[#allocation5 + $0x160] sm:$0xf]
    %v220 = vld [vmem:[#allocation5 + $0x164] sm:$0xf]
    %v221 = vld [vmem:[#allocation5 + $0x168] sm:$0xf]
    %v222 = vld [vmem:[#allocation5 + $0x16c] sm:$0xf]
    %v223 = vld [vmem:[#allocation5 + $0x170] sm:$0xf]
    %v224 = vld [vmem:[#allocation5 + $0x174] sm:$0xf]
    %v225 = vld [vmem:[#allocation5 + $0x178] sm:$0xf]
    %v226 = vld [vmem:[#allocation5 + $0x17c] sm:$0xf]
    %v323 = vunpack.c.l.b16 %v131
    %v324 = vunpack.c.l.b16 %v132
    %v325 = vunpack.c.l.b16 %v133
    %v326 = vunpack.c.l.b16 %v134
    %v327 = vunpack.c.l.b16 %v135
    %v328 = vunpack.c.l.b16 %v136
    %v329 = vunpack.c.l.b16 %v137
    %v330 = vunpack.c.l.b16 %v138
    %v331 = vunpack.c.l.b16 %v139
    %v332 = vunpack.c.l.b16 %v140
    %v333 = vunpack.c.l.b16 %v141
    %v334 = vunpack.c.l.b16 %v142
    %v335 = vunpack.c.l.b16 %v143
    %v336 = vunpack.c.l.b16 %v144
    %v337 = vunpack.c.l.b16 %v145
    %v338 = vunpack.c.l.b16 %v146
    %v339 = vunpack.c.l.b16 %v147
    %v340 = vunpack.c.l.b16 %v148
    %v341 = vunpack.c.l.b16 %v149
    %v342 = vunpack.c.l.b16 %v150
    %v343 = vunpack.c.l.b16 %v151
    %v344 = vunpack.c.l.b16 %v152
    %v345 = vunpack.c.l.b16 %v153
    %v346 = vunpack.c.l.b16 %v154
    %v347 = vunpack.c.l.b16 %v155
    %v348 = vunpack.c.l.b16 %v156
    %v349 = vunpack.c.l.b16 %v157
    %v350 = vunpack.c.l.b16 %v158
    %v351 = vunpack.c.l.b16 %v159
    %v352 = vunpack.c.l.b16 %v160
    %v353 = vunpack.c.l.b16 %v161
    %v354 = vunpack.c.l.b16 %v162
    %v355 = vunpack.c.l.b16 %v163
    %v356 = vunpack.c.l.b16 %v164
    %v357 = vunpack.c.l.b16 %v165
    %v358 = vunpack.c.l.b16 %v166
    %v359 = vunpack.c.l.b16 %v167
    %v360 = vunpack.c.l.b16 %v168
    %v361 = vunpack.c.l.b16 %v169
    %v362 = vunpack.c.l.b16 %v170
    %v363 = vunpack.c.l.b16 %v171
    %v364 = vunpack.c.l.b16 %v172
    %v365 = vunpack.c.l.b16 %v173
    %v366 = vunpack.c.l.b16 %v174
    %v367 = vunpack.c.l.b16 %v175
    %v368 = vunpack.c.l.b16 %v176
    %v369 = vunpack.c.l.b16 %v177
    %v370 = vunpack.c.l.b16 %v178
    %v371 = vunpack.c.l.b16 %v179
    %v372 = vunpack.c.l.b16 %v180
    %v373 = vunpack.c.l.b16 %v181
    %v374 = vunpack.c.l.b16 %v182
    %v375 = vunpack.c.l.b16 %v183
    %v376 = vunpack.c.l.b16 %v184
    %v377 = vunpack.c.l.b16 %v185
    %v378 = vunpack.c.l.b16 %v186
    %v379 = vunpack.c.l.b16 %v187
    %v380 = vunpack.c.l.b16 %v188
    %v381 = vunpack.c.l.b16 %v189
    %v382 = vunpack.c.l.b16 %v190
    %v383 = vunpack.c.l.b16 %v191
    %v384 = vunpack.c.l.b16 %v192
    %v385 = vunpack.c.l.b16 %v193
    %v386 = vunpack.c.l.b16 %v194
    %v387 = vunpack.c.l.b16 %v195
    %v388 = vunpack.c.l.b16 %v196
    %v389 = vunpack.c.l.b16 %v197
    %v390 = vunpack.c.l.b16 %v198
    %v391 = vunpack.c.l.b16 %v199
    %v392 = vunpack.c.l.b16 %v200
    %v393 = vunpack.c.l.b16 %v201
    %v394 = vunpack.c.l.b16 %v202
    %v395 = vunpack.c.l.b16 %v203
    %v396 = vunpack.c.l.b16 %v204
    %v397 = vunpack.c.l.b16 %v205
    %v398 = vunpack.c.l.b16 %v206
    %v399 = vunpack.c.l.b16 %v207
    %v400 = vunpack.c.l.b16 %v208
    %v401 = vunpack.c.l.b16 %v209
    %v402 = vunpack.c.l.b16 %v210
    %v403 = vunpack.c.l.b16 %v211
    %v404 = vunpack.c.l.b16 %v212
    %v405 = vunpack.c.l.b16 %v213
    %v406 = vunpack.c.l.b16 %v214
    %v407 = vunpack.c.l.b16 %v215
    %v408 = vunpack.c.l.b16 %v216
    %v409 = vunpack.c.l.b16 %v217
    %v410 = vunpack.c.l.b16 %v218
    %v411 = vunpack.c.l.b16 %v219
    %v412 = vunpack.c.l.b16 %v220
    %v413 = vunpack.c.l.b16 %v221
    %v414 = vunpack.c.l.b16 %v222
    %v415 = vunpack.c.l.b16 %v223
    %v416 = vunpack.c.l.b16 %v224
    %v417 = vunpack.c.l.b16 %v225
    %v418 = vunpack.c.l.b16 %v226
    %v419 = vpack.c.b16 %v324, %v323
    %v420 = vpack.c.b16 %v326, %v325
    %v421 = vpack.c.b16 %v328, %v327
    %v422 = vpack.c.b16 %v330, %v329
    %v423 = vpack.c.b16 %v332, %v331
    %v424 = vpack.c.b16 %v334, %v333
    %v425 = vpack.c.b16 %v336, %v335
    %v426 = vpack.c.b16 %v338, %v337
    %v427 = vpack.c.b16 %v340, %v339
    %v428 = vpack.c.b16 %v342, %v341
    %v429 = vpack.c.b16 %v344, %v343
    %v430 = vpack.c.b16 %v346, %v345
    %v431 = vpack.c.b16 %v348, %v347
    %v432 = vpack.c.b16 %v350, %v349
    %v433 = vpack.c.b16 %v352, %v351
    %v434 = vpack.c.b16 %v354, %v353
    %v435 = vpack.c.b16 %v356, %v355
    %v436 = vpack.c.b16 %v358, %v357
    %v437 = vpack.c.b16 %v360, %v359
    %v438 = vpack.c.b16 %v362, %v361
    %v439 = vpack.c.b16 %v364, %v363
    %v440 = vpack.c.b16 %v366, %v365
    %v441 = vpack.c.b16 %v368, %v367
    %v442 = vpack.c.b16 %v370, %v369
    %v443 = vpack.c.b16 %v372, %v371
    %v444 = vpack.c.b16 %v374, %v373
    %v445 = vpack.c.b16 %v376, %v375
    %v446 = vpack.c.b16 %v378, %v377
    %v447 = vpack.c.b16 %v380, %v379
    %v448 = vpack.c.b16 %v382, %v381
    %v449 = vpack.c.b16 %v384, %v383
    %v450 = vpack.c.b16 %v386, %v385
    %v451 = vpack.c.b16 %v388, %v387
    %v452 = vpack.c.b16 %v390, %v389
    %v453 = vpack.c.b16 %v392, %v391
    %v454 = vpack.c.b16 %v394, %v393
    %v455 = vpack.c.b16 %v396, %v395
    %v456 = vpack.c.b16 %v398, %v397
    %v457 = vpack.c.b16 %v400, %v399
    %v458 = vpack.c.b16 %v402, %v401
    %v459 = vpack.c.b16 %v404, %v403
    %v460 = vpack.c.b16 %v406, %v405
    %v461 = vpack.c.b16 %v408, %v407
    %v462 = vpack.c.b16 %v410, %v409
    %v463 = vpack.c.b16 %v412, %v411
    %v464 = vpack.c.b16 %v414, %v413
    %v465 = vpack.c.b16 %v416, %v415
    %v466 = vpack.c.b16 %v418, %v417
    %515 = vmatpush.bf16.msra.mxu0 %v426
    %516 = vmatpush.bf16.msra.mxu0 %v425
    %517 = vmatpush.bf16.msra.mxu0 %v424
    %518 = vmatpush.bf16.msra.mxu0 %v423
    %519 = vmatpush.bf16.msra.mxu0 %v422
    %520 = vmatpush.bf16.msra.mxu0 %v421
    %521 = vmatpush.bf16.msra.mxu0 %v420
    %522 = vmatpush.bf16.msra.mxu0 %v419
    %523 = vmatmul.bf16.gmra.mxu0 %v125
    %v524 = vpop.f32.mrf.mxu0
    %v525 = vadd.f32 0.0, %v524
    %v526 = vpop.f32.mrf.mxu0
    %527 = vdwg.mxu0
    %528 = vmatpush.bf16.msra.mxu0 %v434
    %529 = vmatpush.bf16.msra.mxu0 %v433
    %530 = vmatpush.bf16.msra.mxu0 %v432
    %531 = vmatpush.bf16.msra.mxu0 %v431
    %532 = vmatpush.bf16.msra.mxu0 %v430
    %533 = vmatpush.bf16.msra.mxu0 %v429
    %534 = vmatpush.bf16.msra.mxu0 %v428
    %535 = vmatpush.bf16.msra.mxu0 %v427
    %536 = vmatmul.bf16.gmra.mxu0 %v126
    %v537 = vpop.f32.mrf.mxu0
    %v538 = vadd.f32 %v525, %v537
    %v539 = vpop.f32.mrf.mxu0
    %540 = vdwg.mxu0
    %541 = vmatpush.bf16.msra.mxu0 %v442
    %542 = vmatpush.bf16.msra.mxu0 %v441
    %543 = vmatpush.bf16.msra.mxu0 %v440
    %544 = vmatpush.bf16.msra.mxu0 %v439
    %545 = vmatpush.bf16.msra.mxu0 %v438
    %546 = vmatpush.bf16.msra.mxu0 %v437
    %547 = vmatpush.bf16.msra.mxu0 %v436
    %548 = vmatpush.bf16.msra.mxu0 %v435
    %549 = vmatmul.bf16.gmra.mxu0 %v127
    %v550 = vpop.f32.mrf.mxu0
    %v551 = vadd.f32 %v538, %v550
    %v552 = vpop.f32.mrf.mxu0
    %553 = vdwg.mxu0
    %554 = vmatpush.bf16.msra.mxu0 %v450
    %555 = vmatpush.bf16.msra.mxu0 %v449
    %556 = vmatpush.bf16.msra.mxu0 %v448
    %557 = vmatpush.bf16.msra.mxu0 %v447
    %558 = vmatpush.bf16.msra.mxu0 %v446
    %559 = vmatpush.bf16.msra.mxu0 %v445
    %560 = vmatpush.bf16.msra.mxu0 %v444
    %561 = vmatpush.bf16.msra.mxu0 %v443
    %562 = vmatmul.bf16.gmra.mxu0 %v128
    %v563 = vpop.f32.mrf.mxu0
    %v564 = vadd.f32 %v551, %v563
    %v565 = vpop.f32.mrf.mxu0
    %566 = vdwg.mxu0
    %567 = vmatpush.bf16.msra.mxu0 %v458
    %568 = vmatpush.bf16.msra.mxu0 %v457
    %569 = vmatpush.bf16.msra.mxu0 %v456
    %570 = vmatpush.bf16.msra.mxu0 %v455
    %571 = vmatpush.bf16.msra.mxu0 %v454
    %572 = vmatpush.bf16.msra.mxu0 %v453
    %573 = vmatpush.bf16.msra.mxu0 %v452
    %574 = vmatpush.bf16.msra.mxu0 %v451
    %575 = vmatmul.bf16.gmra.mxu0 %v129
    %v576 = vpop.f32.mrf.mxu0
    %v577 = vadd.f32 %v564, %v576
    %v578 = vpop.f32.mrf.mxu0
    %579 = vdwg.mxu0
    %580 = vmatpush.bf16.msra.mxu0 %v466
    %581 = vmatpush.bf16.msra.mxu0 %v465
    %582 = vmatpush.bf16.msra.mxu0 %v464
    %583 = vmatpush.bf16.msra.mxu0 %v463
    %584 = vmatpush.bf16.msra.mxu0 %v462
    %585 = vmatpush.bf16.msra.mxu0 %v461
    %586 = vmatpush.bf16.msra.mxu0 %v460
    %587 = vmatpush.bf16.msra.mxu0 %v459
    %588 = vmatmul.bf16.gmra.mxu0 %v130
    %v589 = vpop.f32.mrf.mxu0
    %v590 = vadd.f32 %v577, %v589
    %v591 = vpop.f32.mrf.mxu0
    %592 = vdwg.mxu0
    %v593 = vmul.f32 %v590, %v590
    %vm594 = vcmask 1041408
    %v595 = vsel %vm594, %v593, 0.0
    %596 = vadd.xlane.f32.xlu0 %v595
    %v597 = vpop.xlane.xlu0 %596
    %v598 = vmax.f32 %v597, 1e-24
    %v599 = vrsqrt.pop %v598
    %v600 = vmul.f32 %v599, %v598
    %v601 = vmul.f32 %v600, %v599
    %v602 = vmul.f32 0.5, %v601
    %v603 = vsub.f32 1.5, %v602
    %v604 = vmul.f32 %v599, %v603
    %vm605 = vweird.f32 %v598
    %vm606 = vweird.f32 %v599
    %vm607 = vmor %vm605, %vm606
    %v608 = vsel %vm607, %v599, %v604
    %v609 = vmul.f32 %v590, %v608
    %v610 = vpack.c.bf16 %v609, %v609
    %v611 = vld [vmem:[#allocation7] sm:$0xff]
    %v612 = vld [vmem:[#allocation7 + $0x8] sm:$0xff]
    %v613 = vld [vmem:[#allocation7 + $0x10] sm:$0xff]
    %v614 = vld [vmem:[#allocation7 + $0x18] sm:$0xff]
    %v615 = vld [vmem:[#allocation7 + $0x20] sm:$0xff]
    %v616 = vld [vmem:[#allocation7 + $0x28] sm:$0xff]
    %v617 = vld [vmem:[#allocation7 + $0x30] sm:$0xff]
    %v618 = vld [vmem:[#allocation7 + $0x38] sm:$0xff]
    %v619 = vld [vmem:[#allocation7 + $0x40] sm:$0xff]
    %v620 = vld [vmem:[#allocation7 + $0x48] sm:$0xff]
    %v621 = vld [vmem:[#allocation7 + $0x50] sm:$0xff]
    %v622 = vld [vmem:[#allocation7 + $0x58] sm:$0xff]
    %v623 = vld [vmem:[#allocation7 + $0x60] sm:$0xff]
    %v624 = vld [vmem:[#allocation7 + $0x68] sm:$0xff]
    %v625 = vld [vmem:[#allocation7 + $0x70] sm:$0xff]
    %v626 = vld [vmem:[#allocation7 + $0x78] sm:$0xff]
    %v627 = vld [vmem:[%s3] sm:$0x3]
    %v629 = vperm.slane %v627, 0
    %v630 = vperm.slane %v627, 1
    %v649 = vunpack.c.l.b16 %v611
    %v650 = vunpack.c.h.b16 %v611
    %v651 = vunpack.c.l.b16 %v612
    %v652 = vunpack.c.h.b16 %v612
    %v653 = vunpack.c.l.b16 %v613
    %v654 = vunpack.c.h.b16 %v613
    %v655 = vunpack.c.l.b16 %v614
    %v656 = vunpack.c.h.b16 %v614
    %v657 = vunpack.c.l.b16 %v615
    %v658 = vunpack.c.h.b16 %v615
    %v659 = vunpack.c.l.b16 %v616
    %v660 = vunpack.c.h.b16 %v616
    %v661 = vunpack.c.l.b16 %v617
    %v662 = vunpack.c.h.b16 %v617
    %v663 = vunpack.c.l.b16 %v618
    %v664 = vunpack.c.h.b16 %v618
    %v665 = vunpack.c.l.b16 %v619
    %v666 = vunpack.c.h.b16 %v619
    %v667 = vunpack.c.l.b16 %v620
    %v668 = vunpack.c.h.b16 %v620
    %v669 = vunpack.c.l.b16 %v621
    %v670 = vunpack.c.h.b16 %v621
    %v671 = vunpack.c.l.b16 %v622
    %v672 = vunpack.c.h.b16 %v622
    %v673 = vunpack.c.l.b16 %v623
    %v674 = vunpack.c.h.b16 %v623
    %v675 = vunpack.c.l.b16 %v624
    %v676 = vunpack.c.h.b16 %v624
    %v677 = vunpack.c.l.b16 %v625
    %v678 = vunpack.c.h.b16 %v625
    %v679 = vunpack.c.l.b16 %v626
    %v680 = vunpack.c.h.b16 %v626
    %v681 = vpack.c.b16 %v651, %v649
    %v682 = vpack.c.b16 %v652, %v650
    %v683 = vpack.c.b16 %v655, %v653
    %v684 = vpack.c.b16 %v656, %v654
    %v685 = vpack.c.b16 %v659, %v657
    %v686 = vpack.c.b16 %v660, %v658
    %v687 = vpack.c.b16 %v663, %v661
    %v688 = vpack.c.b16 %v664, %v662
    %v689 = vpack.c.b16 %v667, %v665
    %v690 = vpack.c.b16 %v668, %v666
    %v691 = vpack.c.b16 %v671, %v669
    %v692 = vpack.c.b16 %v672, %v670
    %v693 = vpack.c.b16 %v675, %v673
    %v694 = vpack.c.b16 %v676, %v674
    %v695 = vpack.c.b16 %v679, %v677
    %v696 = vpack.c.b16 %v680, %v678
    %713 = vmatpush.bf16.msra.mxu0 %v695
    %714 = vmatpush.bf16.msra.mxu0 %v693
    %715 = vmatpush.bf16.msra.mxu0 %v691
    %716 = vmatpush.bf16.msra.mxu0 %v689
    %717 = vmatpush.bf16.msra.mxu0 %v687
    %718 = vmatpush.bf16.msra.mxu0 %v685
    %719 = vmatpush.bf16.msra.mxu0 %v683
    %720 = vmatpush.bf16.msra.mxu0 %v681
    %721 = vmatmul.bf16.gmra.mxu0 %v610
    %v722 = vpop.f32.mrf.mxu0
    %v723 = vadd.f32 %v629, %v722
    %v724 = vpop.f32.mrf.mxu0
    %725 = vdwg.mxu0
    %726 = vmatpush.bf16.msra.mxu0 %v696
    %727 = vmatpush.bf16.msra.mxu0 %v694
    %728 = vmatpush.bf16.msra.mxu0 %v692
    %729 = vmatpush.bf16.msra.mxu0 %v690
    %730 = vmatpush.bf16.msra.mxu0 %v688
    %731 = vmatpush.bf16.msra.mxu0 %v686
    %732 = vmatpush.bf16.msra.mxu0 %v684
    %733 = vmatpush.bf16.msra.mxu0 %v682
    %734 = vmatmul.bf16.gmra.mxu0 %v610
    %v735 = vpop.f32.mrf.mxu0
    %v736 = vadd.f32 %v630, %v735
    %v737 = vpop.f32.mrf.mxu0
    %738 = vdwg.mxu0
    %v739 = vmax.f32 %v723, 0.0
    %v740 = vmax.f32 %v736, 0.0
    %v741 = vpack.c.bf16 %v739, %v739
    %v742 = vpack.c.bf16 %v740, %v740
    %v743 = vld [vmem:[#allocation8] sm:$0xf]
    %v744 = vld [vmem:[#allocation8 + $0x4] sm:$0xf]
    %v745 = vld [vmem:[#allocation8 + $0x8] sm:$0xf]
    %v746 = vld [vmem:[#allocation8 + $0xc] sm:$0xf]
    %v747 = vld [vmem:[#allocation8 + $0x10] sm:$0xf]
    %v748 = vld [vmem:[#allocation8 + $0x14] sm:$0xf]
    %v749 = vld [vmem:[#allocation8 + $0x18] sm:$0xf]
    %v750 = vld [vmem:[#allocation8 + $0x1c] sm:$0xf]
    %v751 = vld [vmem:[#allocation8 + $0x20] sm:$0xf]
    %v752 = vld [vmem:[#allocation8 + $0x24] sm:$0xf]
    %v753 = vld [vmem:[#allocation8 + $0x28] sm:$0xf]
    %v754 = vld [vmem:[#allocation8 + $0x2c] sm:$0xf]
    %v755 = vld [vmem:[#allocation8 + $0x30] sm:$0xf]
    %v756 = vld [vmem:[#allocation8 + $0x34] sm:$0xf]
    %v757 = vld [vmem:[#allocation8 + $0x38] sm:$0xf]
    %v758 = vld [vmem:[#allocation8 + $0x3c] sm:$0xf]
    %v759 = vld [vmem:[#allocation8 + $0x40] sm:$0xf]
    %v760 = vld [vmem:[#allocation8 + $0x44] sm:$0xf]
    %v761 = vld [vmem:[#allocation8 + $0x48] sm:$0xf]
    %v762 = vld [vmem:[#allocation8 + $0x4c] sm:$0xf]
    %v763 = vld [vmem:[#allocation8 + $0x50] sm:$0xf]
    %v764 = vld [vmem:[#allocation8 + $0x54] sm:$0xf]
    %v765 = vld [vmem:[#allocation8 + $0x58] sm:$0xf]
    %v766 = vld [vmem:[#allocation8 + $0x5c] sm:$0xf]
    %v767 = vld [vmem:[#allocation8 + $0x60] sm:$0xf]
    %v768 = vld [vmem:[#allocation8 + $0x64] sm:$0xf]
    %v769 = vld [vmem:[#allocation8 + $0x68] sm:$0xf]
    %v770 = vld [vmem:[#allocation8 + $0x6c] sm:$0xf]
    %v771 = vld [vmem:[#allocation8 + $0x70] sm:$0xf]
    %v772 = vld [vmem:[#allocation8 + $0x74] sm:$0xf]
    %v773 = vld [vmem:[#allocation8 + $0x78] sm:$0xf]
    %v774 = vld [vmem:[#allocation8 + $0x7c] sm:$0xf]
    %v775 = vld [vmem:[%s5] sm:$0x1]
    %v777 = vperm.slane %v775, 0
    %v811 = vunpack.c.l.b16 %v743
    %v812 = vunpack.c.l.b16 %v744
    %v813 = vunpack.c.l.b16 %v745
    %v814 = vunpack.c.l.b16 %v746
    %v815 = vunpack.c.l.b16 %v747
    %v816 = vunpack.c.l.b16 %v748
    %v817 = vunpack.c.l.b16 %v749
    %v818 = vunpack.c.l.b16 %v750
    %v819 = vunpack.c.l.b16 %v751
    %v820 = vunpack.c.l.b16 %v752
    %v821 = vunpack.c.l.b16 %v753
    %v822 = vunpack.c.l.b16 %v754
    %v823 = vunpack.c.l.b16 %v755
    %v824 = vunpack.c.l.b16 %v756
    %v825 = vunpack.c.l.b16 %v757
    %v826 = vunpack.c.l.b16 %v758
    %v827 = vunpack.c.l.b16 %v759
    %v828 = vunpack.c.l.b16 %v760
    %v829 = vunpack.c.l.b16 %v761
    %v830 = vunpack.c.l.b16 %v762
    %v831 = vunpack.c.l.b16 %v763
    %v832 = vunpack.c.l.b16 %v764
    %v833 = vunpack.c.l.b16 %v765
    %v834 = vunpack.c.l.b16 %v766
    %v835 = vunpack.c.l.b16 %v767
    %v836 = vunpack.c.l.b16 %v768
    %v837 = vunpack.c.l.b16 %v769
    %v838 = vunpack.c.l.b16 %v770
    %v839 = vunpack.c.l.b16 %v771
    %v840 = vunpack.c.l.b16 %v772
    %v841 = vunpack.c.l.b16 %v773
    %v842 = vunpack.c.l.b16 %v774
    %v843 = vpack.c.b16 %v812, %v811
    %v844 = vpack.c.b16 %v814, %v813
    %v845 = vpack.c.b16 %v816, %v815
    %v846 = vpack.c.b16 %v818, %v817
    %v847 = vpack.c.b16 %v820, %v819
    %v848 = vpack.c.b16 %v822, %v821
    %v849 = vpack.c.b16 %v824, %v823
    %v850 = vpack.c.b16 %v826, %v825
    %v851 = vpack.c.b16 %v828, %v827
    %v852 = vpack.c.b16 %v830, %v829
    %v853 = vpack.c.b16 %v832, %v831
    %v854 = vpack.c.b16 %v834, %v833
    %v855 = vpack.c.b16 %v836, %v835
    %v856 = vpack.c.b16 %v838, %v837
    %v857 = vpack.c.b16 %v840, %v839
    %v858 = vpack.c.b16 %v842, %v841
    %875 = vmatpush.bf16.msra.mxu0 %v850
    %876 = vmatpush.bf16.msra.mxu0 %v849
    %877 = vmatpush.bf16.msra.mxu0 %v848
    %878 = vmatpush.bf16.msra.mxu0 %v847
    %879 = vmatpush.bf16.msra.mxu0 %v846
    %880 = vmatpush.bf16.msra.mxu0 %v845
    %881 = vmatpush.bf16.msra.mxu0 %v844
    %882 = vmatpush.bf16.msra.mxu0 %v843
    %883 = vmatmul.bf16.gmra.mxu0 %v741
    %v884 = vpop.f32.mrf.mxu0
    %v885 = vadd.f32 %v777, %v884
    %v886 = vpop.f32.mrf.mxu0
    %887 = vdwg.mxu0
    %888 = vmatpush.bf16.msra.mxu0 %v858
    %889 = vmatpush.bf16.msra.mxu0 %v857
    %890 = vmatpush.bf16.msra.mxu0 %v856
    %891 = vmatpush.bf16.msra.mxu0 %v855
    %892 = vmatpush.bf16.msra.mxu0 %v854
    %893 = vmatpush.bf16.msra.mxu0 %v853
    %894 = vmatpush.bf16.msra.mxu0 %v852
    %895 = vmatpush.bf16.msra.mxu0 %v851
    %896 = vmatmul.bf16.gmra.mxu0 %v742
    %v897 = vpop.f32.mrf.mxu0
    %v898 = vadd.f32 %v885, %v897
    %v899 = vpop.f32.mrf.mxu0
    %900 = vdwg.mxu0
    %v901 = vmax.f32 %v898, 0.0
    %v902 = vpack.c.bf16 %v901, %v901
    %v903 = vld [vmem:[#allocation10] sm:$0xf]
    %v904 = vld [vmem:[#allocation10 + $0x4] sm:$0xf]
    %v905 = vld [vmem:[#allocation10 + $0x8] sm:$0xf]
    %v906 = vld [vmem:[#allocation10 + $0xc] sm:$0xf]
    %v907 = vld [vmem:[#allocation10 + $0x10] sm:$0xf]
    %v908 = vld [vmem:[#allocation10 + $0x14] sm:$0xf]
    %v909 = vld [vmem:[#allocation10 + $0x18] sm:$0xf]
    %v910 = vld [vmem:[#allocation10 + $0x1c] sm:$0xf]
    %v911 = vld [vmem:[#allocation10 + $0x20] sm:$0xf]
    %v912 = vld [vmem:[#allocation10 + $0x24] sm:$0xf]
    %v913 = vld [vmem:[#allocation10 + $0x28] sm:$0xf]
    %v914 = vld [vmem:[#allocation10 + $0x2c] sm:$0xf]
    %v915 = vld [vmem:[#allocation10 + $0x30] sm:$0xf]
    %v916 = vld [vmem:[#allocation10 + $0x34] sm:$0xf]
    %v917 = vld [vmem:[#allocation10 + $0x38] sm:$0xf]
    %v918 = vld [vmem:[#allocation10 + $0x3c] sm:$0xf]
    %v919 = vld [vmem:[%s7] sm:$0x1]
    %v921 = vperm.slane %v919, 0
    %v939 = vunpack.c.l.b16 %v903
    %v940 = vunpack.c.l.b16 %v904
    %v941 = vunpack.c.l.b16 %v905
    %v942 = vunpack.c.l.b16 %v906
    %v943 = vunpack.c.l.b16 %v907
    %v944 = vunpack.c.l.b16 %v908
    %v945 = vunpack.c.l.b16 %v909
    %v946 = vunpack.c.l.b16 %v910
    %v947 = vunpack.c.l.b16 %v911
    %v948 = vunpack.c.l.b16 %v912
    %v949 = vunpack.c.l.b16 %v913
    %v950 = vunpack.c.l.b16 %v914
    %v951 = vunpack.c.l.b16 %v915
    %v952 = vunpack.c.l.b16 %v916
    %v953 = vunpack.c.l.b16 %v917
    %v954 = vunpack.c.l.b16 %v918
    %v955 = vpack.c.b16 %v940, %v939
    %v956 = vpack.c.b16 %v942, %v941
    %v957 = vpack.c.b16 %v944, %v943
    %v958 = vpack.c.b16 %v946, %v945
    %v959 = vpack.c.b16 %v948, %v947
    %v960 = vpack.c.b16 %v950, %v949
    %v961 = vpack.c.b16 %v952, %v951
    %v962 = vpack.c.b16 %v954, %v953
    %971 = vmatpush.bf16.msra.mxu0 %v962
    %972 = vmatpush.bf16.msra.mxu0 %v961
    %973 = vmatpush.bf16.msra.mxu0 %v960
    %974 = vmatpush.bf16.msra.mxu0 %v959
    %975 = vmatpush.bf16.msra.mxu0 %v958
    %976 = vmatpush.bf16.msra.mxu0 %v957
    %977 = vmatpush.bf16.msra.mxu0 %v956
    %978 = vmatpush.bf16.msra.mxu0 %v955
    %979 = vmatmul.bf16.gmra.mxu0 %v902
    %v980 = vpop.f32.mrf.mxu0
    %v981 = vadd.f32 %v921, %v980
    %v982 = vpop.f32.mrf.mxu0
    %983 = vdwg.mxu0
    %984 = vst [vmem:[#allocation11] sm:$0x3] %v981
    // Predicated region
    $region54: #{tpu_custom_call.1} parent=1 // pred_check
      _
    $region55: #{tpu_custom_call.1} parent=1 // pred_check_branch
      %986 = sbr.rel (0) target = $region57
    $region56: #{tpu_custom_call.1} parent=1 // pred_region
      %988 = vsyncadd [#allocation4], 0
      %s990 = sshll.u32 [#allocation11], 4
      %s991 = int_to_ptr.vmem [resolvable:$true] %s990
      %s992 = sshll.u32 %s8, 4
      %s993 = int_to_ptr.hbm [resolvable:$true] %s992
      %995 = dma.vmem_to_hbm [thread:$0]  %s991, 32, %s993, [#allocation4]
    $region57: #{tpu_custom_call.1} parent=1 // pred_fallthru
      _
    // Predicated region
    $region58: #{tpu_custom_call.1} parent=1 // pred_check
      _
    $region59: #{tpu_custom_call.1} parent=1 // pred_check_branch
      %997 = sbr.rel (0) target = $region61
    $region60: #{tpu_custom_call.1} parent=1 // pred_region
      %999 = dma.done [#allocation4], 32
    $region61: #{tpu_custom_call.1} parent=1 // pred_fallthru
      _
    %1000 = vsyncpa [#allocation3], 1
    %1001 = vsyncpa [#allocation6], 1
    %1002 = vsyncpa [#allocation9], 1
    %1003 = vsyncpa [#allocation4], 1

</llo_original>
